<compile_context>
chip_gen: v7x
topology: tpu7x:2x2x1
jax: 0.10.0
libtpu: 0.0.40
codegen_flags: <defaults>
</compile_context>

<pallas_src>
import jax
import jax.numpy as jnp
from jax.experimental import pallas as pl
from jax.experimental.pallas import tpu as pltpu

LANE = 128       # hardware lane width (hidden dims are padded to this)
IN_FEATURES = 100


def _mlp_kernel(x_ref, w1_ref, b1_ref, w2_ref, b2_ref, w3_ref, b3_ref, o_ref):
    # Layer 1: (TB,100) @ (100,128) + (1,128) -> sigmoid   (MXU + VPU/EUP)
    h1 = jnp.dot(x_ref[...], w1_ref[...], preferred_element_type=jnp.float32)
    h1 = jax.nn.sigmoid(h1 + b1_ref[...])
    # Layer 2: (TB,128) @ (128,128) + (1,128) -> sigmoid
    # (padded K rows of W2 are zero, so padded h1 lanes contribute nothing)
    h2 = jnp.dot(h1, w2_ref[...], preferred_element_type=jnp.float32)
    h2 = jax.nn.sigmoid(h2 + b2_ref[...])
    # Layer 3: N=1 -> lane reduction on VPU/XLU instead of a 1-column MXU matmul.
    # w3_ref is the (1,128) row-form of W3; padded lanes are zero.
    logits = jnp.sum(h2 * w3_ref[...], axis=-1, keepdims=True) + b3_ref[...]
    o_ref[...] = jax.nn.sigmoid(logits)


def _pad_to(a, shape):
    pads = [(0, t - s) for s, t in zip(a.shape, shape)]
    return jnp.pad(a, pads)


def net_forward(x, params, *, tb=1024):
    """Forward pass of Net.  x: (B, 100) f32.  params: (w1,b1,w2,b2,w3,b3) with
    weights stored (in_features, out_features) and biases (1, out_features)."""
    w1, b1, w2, b2, w3, b3 = params
    B = x.shape[0]
    xp = x.astype(jnp.float32)

    # ---- pad the (tiny) weights to MXU-friendly shapes; math stays exact ----
    w1p = _pad_to(w1, (IN_FEATURES, LANE))       # out dim 75 -> 128
    b1p = _pad_to(b1, (1, LANE))
    w2p = _pad_to(w2, (LANE, LANE))              # rows 75..127 zero -> kill h1 pad cols
    b2p = _pad_to(b2, (1, LANE))
    w3p = _pad_to(w3.reshape(1, -1), (1, LANE))  # row form; lanes 50..127 zero
    b3p = b3.reshape(1, 1)

    # ---- batch tiling: TB multiple of 8, batch zero-padded to multiple of TB ----
    TB = int(min(tb, max(8, ((B + 7) // 8) * 8)))
    B_pad = ((B + TB - 1) // TB) * TB
    if B_pad != B:
        xp = jnp.pad(xp, ((0, B_pad - B), (0, 0)))
    grid = (B_pad // TB,)

    cost = pl.CostEstimate(
        flops=2 * B_pad * (100 * 75 + 75 * 50 + 50 * 1),
        transcendentals=B_pad * (75 + 50 + 1),
        bytes_accessed=4 * (B_pad * IN_FEATURES + IN_FEATURES * LANE
                            + LANE * LANE + 3 * LANE + 1 + B_pad),
    )

    out = pl.pallas_call(
        _mlp_kernel,
        out_shape=jax.ShapeDtypeStruct((B_pad, 1), jnp.float32),
        grid=grid,
        in_specs=[
            pl.BlockSpec((TB, IN_FEATURES), lambda i: (i, 0)),   # x tile (pipelined)
            pl.BlockSpec((IN_FEATURES, LANE), lambda i: (0, 0)), # w1 (resident)
            pl.BlockSpec((1, LANE), lambda i: (0, 0)),           # b1
            pl.BlockSpec((LANE, LANE), lambda i: (0, 0)),        # w2
            pl.BlockSpec((1, LANE), lambda i: (0, 0)),           # b2
            pl.BlockSpec((1, LANE), lambda i: (0, 0)),           # w3 (row form)
            pl.BlockSpec((1, 1), lambda i: (0, 0)),              # b3
        ],
        out_specs=pl.BlockSpec((TB, 1), lambda i: (i, 0)),
        compiler_params=pltpu.CompilerParams(
            dimension_semantics=("parallel",),
        ),
        cost_estimate=cost,
    )(xp, w1p, b1p, w2p, b2p, w3p, b3p)

    return out[:B]


def init_params(key):
    """Deterministic init mimicking PyTorch's default Linear init
    (uniform(-1/sqrt(fan_in), 1/sqrt(fan_in)))."""
    dims = [(100, 75), (75, 50), (50, 1)]
    params = []
    for (fan_in, fan_out) in dims:
        key, kw, kb = jax.random.split(key, 3)
        bound = 1.0 / (fan_in ** 0.5)
        w = jax.random.uniform(kw, (fan_in, fan_out), jnp.float32, -bound, bound)
        b = jax.random.uniform(kb, (1, fan_out), jnp.float32, -bound, bound)
        params += [w, b]
    return tuple(params)


def _reference(x, params):
    w1, b1, w2, b2, w3, b3 = params
    h = jax.nn.sigmoid(x @ w1 + b1)
    h = jax.nn.sigmoid(h @ w2 + b2)
    return jax.nn.sigmoid(h @ w3 + b3)


if __name__ == "__main__":
    key = jax.random.PRNGKey(0)
    k_x, k_p, k_x2 = jax.random.split(key, 3)
    params = init_params(k_p)

    # Small-shape check (single tile, batch rounded 8 -> 8).
    B = 8
    x = jax.random.normal(k_x, (B, 100), dtype=jnp.float32)
    out = jax.block_until_ready(net_forward(x, params))
    ref = _reference(x, params)
    assert out.shape == (B, 1)
    assert jnp.allclose(out, ref, atol=2e-5, rtol=2e-5)

    # Multi-tile check: exercises the batch grid + remainder-padding path
    # (B not a multiple of the tile size).
    B2 = 300
    x2 = jax.random.normal(k_x2, (B2, 100), dtype=jnp.float32)
    out2 = jax.block_until_ready(net_forward(x2, params, tb=128))
    ref2 = _reference(x2, params)
    assert out2.shape == (B2, 1)
    assert jnp.allclose(out2, ref2, atol=2e-5, rtol=2e-5)

    print("KERNEL_OK")
</pallas_src>

<mosaic_0001>
module attributes {stable_mosaic.version = 11 : i64} {
  func.func @_mlp_kernel(%arg0: i32, %arg1: memref<8x100xf32, #tpu.memory_space<vmem>>, %arg2: memref<100x128xf32, #tpu.memory_space<vmem>>, %arg3: memref<1x128xf32, #tpu.memory_space<vmem>>, %arg4: memref<128x128xf32, #tpu.memory_space<vmem>>, %arg5: memref<1x128xf32, #tpu.memory_space<vmem>>, %arg6: memref<1x128xf32, #tpu.memory_space<vmem>>, %arg7: memref<1x1xf32, #tpu.memory_space<vmem>>, %arg8: memref<8x1xf32, #tpu.memory_space<vmem>>) attributes {dimension_semantics = [#tpu.dimension_semantics<parallel>], iteration_bounds = array<i64: 1>, scalar_prefetch = 0 : i64, scratch_operands = 0 : i64, tpu.core_type = #tpu.core_type<tc>, window_params = [{transform_indices = @transform_0, window_bounds = array<i64: 8, 100>}, {pipeline_mode = #tpu.pipeline_mode<synchronous>, transform_indices = @transform_1, window_bounds = array<i64: 100, 128>}, {pipeline_mode = #tpu.pipeline_mode<synchronous>, transform_indices = @transform_2, window_bounds = array<i64: 1, 128>}, {pipeline_mode = #tpu.pipeline_mode<synchronous>, transform_indices = @transform_3, window_bounds = array<i64: 128, 128>}, {pipeline_mode = #tpu.pipeline_mode<synchronous>, transform_indices = @transform_4, window_bounds = array<i64: 1, 128>}, {pipeline_mode = #tpu.pipeline_mode<synchronous>, transform_indices = @transform_5, window_bounds = array<i64: 1, 128>}, {pipeline_mode = #tpu.pipeline_mode<synchronous>, transform_indices = @transform_6, window_bounds = array<i64: 1, 1>}, {transform_indices = @transform_7, window_bounds = array<i64: 8, 1>}]} {
    %c0 = arith.constant 0 : index
    %c0_0 = arith.constant 0 : index
    %0 = vector.load %arg1[%c0, %c0_0] : memref<8x100xf32, #tpu.memory_space<vmem>>, vector<8x100xf32>
    %c0_1 = arith.constant 0 : index
    %c0_2 = arith.constant 0 : index
    %1 = vector.load %arg2[%c0_1, %c0_2] : memref<100x128xf32, #tpu.memory_space<vmem>>, vector<100x128xf32>
    %cst = arith.constant dense<0.000000e+00> : vector<8x128xf32>
    %2 = tpu.matmul %0, %1, %cst {dimension_numbers = #tpu.dot_dimension_numbers<[1], [0], [0], [1], [0, 0, 1, 1], [], []>} : vector<8x100xf32>, vector<100x128xf32>, vector<8x128xf32> -> vector<8x128xf32>
    %c0_3 = arith.constant 0 : index
    %c0_4 = arith.constant 0 : index
    %3 = vector.load %arg3[%c0_3, %c0_4] : memref<1x128xf32, #tpu.memory_space<vmem>>, vector<1x128xf32>
    %4 = vector.broadcast %3 : vector<1x128xf32> to vector<8x128xf32>
    %5 = arith.addf %2, %4 : vector<8x128xf32>
    %6 = arith.negf %5 : vector<8x128xf32>
    %7 = math.exp %6 : vector<8x128xf32>
    %cst_5 = arith.constant 1.000000e+00 : f32
    %8 = vector.broadcast %cst_5 : f32 to vector<8x128xf32>
    %9 = arith.addf %8, %7 : vector<8x128xf32>
    %10 = arith.divf %8, %9 : vector<8x128xf32>
    %c0_6 = arith.constant 0 : index
    %c0_7 = arith.constant 0 : index
    %11 = vector.load %arg4[%c0_6, %c0_7] : memref<128x128xf32, #tpu.memory_space<vmem>>, vector<128x128xf32>
    %cst_8 = arith.constant dense<0.000000e+00> : vector<8x128xf32>
    %12 = tpu.matmul %10, %11, %cst_8 {dimension_numbers = #tpu.dot_dimension_numbers<[1], [0], [0], [1], [0, 0, 1, 1], [], []>} : vector<8x128xf32>, vector<128x128xf32>, vector<8x128xf32> -> vector<8x128xf32>
    %c0_9 = arith.constant 0 : index
    %c0_10 = arith.constant 0 : index
    %13 = vector.load %arg5[%c0_9, %c0_10] : memref<1x128xf32, #tpu.memory_space<vmem>>, vector<1x128xf32>
    %14 = vector.broadcast %13 : vector<1x128xf32> to vector<8x128xf32>
    %15 = arith.addf %12, %14 : vector<8x128xf32>
    %16 = arith.negf %15 : vector<8x128xf32>
    %17 = math.exp %16 : vector<8x128xf32>
    %cst_11 = arith.constant 1.000000e+00 : f32
    %18 = vector.broadcast %cst_11 : f32 to vector<8x128xf32>
    %19 = arith.addf %18, %17 : vector<8x128xf32>
    %20 = arith.divf %18, %19 : vector<8x128xf32>
    %c0_12 = arith.constant 0 : index
    %c0_13 = arith.constant 0 : index
    %21 = vector.load %arg6[%c0_12, %c0_13] : memref<1x128xf32, #tpu.memory_space<vmem>>, vector<1x128xf32>
    %22 = vector.broadcast %21 : vector<1x128xf32> to vector<8x128xf32>
    %23 = arith.mulf %20, %22 : vector<8x128xf32>
    %cst_14 = arith.constant dense<0.000000e+00> : vector<8xf32>
    %24 = vector.multi_reduction <add>, %23, %cst_14 [1] : vector<8x128xf32> to vector<8xf32>
    %25 = vector.shape_cast %24 : vector<8xf32> to vector<8x1xf32>
    %c0_15 = arith.constant 0 : index
    %c0_16 = arith.constant 0 : index
    %26 = vector.load %arg7[%c0_15, %c0_16] : memref<1x1xf32, #tpu.memory_space<vmem>>, vector<1x1xf32>
    %27 = vector.broadcast %26 : vector<1x1xf32> to vector<8x1xf32>
    %28 = arith.addf %25, %27 : vector<8x1xf32>
    %29 = arith.negf %28 : vector<8x1xf32>
    %30 = math.exp %29 : vector<8x1xf32>
    %cst_17 = arith.constant 1.000000e+00 : f32
    %31 = vector.broadcast %cst_17 : f32 to vector<8x1xf32>
    %32 = arith.addf %31, %30 : vector<8x1xf32>
    %33 = arith.divf %31, %32 : vector<8x1xf32>
    %c0_18 = arith.constant 0 : index
    %c0_19 = arith.constant 0 : index
    %34 = vector.load %arg8[%c0_18, %c0_19] : memref<8x1xf32, #tpu.memory_space<vmem>>, vector<8x1xf32>
    tpu.vector_store %arg8[%c0_18, %c0_19], %33 {strides = array<i32>} : memref<8x1xf32, #tpu.memory_space<vmem>>, vector<8x1xf32>,
    return
  }
  func.func @transform_0(%arg0: i32) -> (i32, i32) {
    %c0_i32 = arith.constant 0 : i32
    %c0_i32_0 = arith.constant 0 : i32
    return %arg0, %c0_i32 : i32, i32
  }
  func.func @transform_1(%arg0: i32) -> (i32, i32) {
    %c0_i32 = arith.constant 0 : i32
    %c0_i32_0 = arith.constant 0 : i32
    %c0_i32_1 = arith.constant 0 : i32
    return %c0_i32, %c0_i32_0 : i32, i32
  }
  func.func @transform_2(%arg0: i32) -> (i32, i32) {
    %c0_i32 = arith.constant 0 : i32
    %c0_i32_0 = arith.constant 0 : i32
    %c0_i32_1 = arith.constant 0 : i32
    return %c0_i32, %c0_i32_0 : i32, i32
  }
  func.func @transform_3(%arg0: i32) -> (i32, i32) {
    %c0_i32 = arith.constant 0 : i32
    %c0_i32_0 = arith.constant 0 : i32
    %c0_i32_1 = arith.constant 0 : i32
    return %c0_i32, %c0_i32_0 : i32, i32
  }
  func.func @transform_4(%arg0: i32) -> (i32, i32) {
    %c0_i32 = arith.constant 0 : i32
    %c0_i32_0 = arith.constant 0 : i32
    %c0_i32_1 = arith.constant 0 : i32
    return %c0_i32, %c0_i32_0 : i32, i32
  }
  func.func @transform_5(%arg0: i32) -> (i32, i32) {
    %c0_i32 = arith.constant 0 : i32
    %c0_i32_0 = arith.constant 0 : i32
    %c0_i32_1 = arith.constant 0 : i32
    return %c0_i32, %c0_i32_0 : i32, i32
  }
  func.func @transform_6(%arg0: i32) -> (i32, i32) {
    %c0_i32 = arith.constant 0 : i32
    %c0_i32_0 = arith.constant 0 : i32
    %c0_i32_1 = arith.constant 0 : i32
    return %c0_i32, %c0_i32_0 : i32, i32
  }
  func.func @transform_7(%arg0: i32) -> (i32, i32) {
    %c0_i32 = arith.constant 0 : i32
    %c0_i32_0 = arith.constant 0 : i32
    return %arg0, %c0_i32 : i32, i32
  }
}

</mosaic_0001>

<llo_original>
// kernel: tpu_custom_call.1
$region0: #{tpu_custom_call.1}
  #allocation0 [shape = 'u32[]', space=smem, size = 0x4, offset = 0x4, fixed_abs, tag = 'smem constant byte address 0x4 - core index']
  #allocation1 [shape = 'u32[144,128]{1,0:T(1,128)}', space=vmem, size = 0x12000, scoped, tag = 'internal scratch']
  #allocation2 [shape = 'f32[1,1]{1,0:T(1,128)S(1)}', space=vmem, size = 0x200, scoped, tag = 'scoped memory for tpu_custom_call.1']
  %s0 = inlined_call_operand.hbm [shape: f32[8,100], index: 0, kind: input, shape index: {}]
  %s1 = inlined_call_operand.hbm [shape: f32[100,128], index: 1, kind: input, shape index: {}]
  %s2 = inlined_call_operand.vmem [shape: f32[1,128], index: 2, kind: input, shape index: {}]
  %s3 = inlined_call_operand.hbm [shape: f32[128,128], index: 3, kind: input, shape index: {}]
  %s4 = inlined_call_operand.vmem [shape: f32[1,128], index: 4, kind: input, shape index: {}]
  %s5 = inlined_call_operand.vmem [shape: f32[1,128], index: 5, kind: input, shape index: {}]
  %s6 = inlined_call_operand.<no memory space> [shape: f32[1,1], index: 6, kind: input, shape index: {}]
  %s7 = inlined_call_operand.vmem [shape: f32[8,1], index: 7, kind: output, shape index: {}]
  %s8 = sld [smem:[#allocation0]]
  $region50: #{tpu_custom_call.1} parent=0
    _
  %s10 = ssub.s32 1, %s8
  %s11 = scalar_select 0, %s10, %s8
  %v12 = vstv %s6
  %13 = vst [vmem:[#allocation2] sm:$0x1] %v12
  $region1: #{tpu_custom_call.1} parent=0
    #allocation3 [shape = 'u8[4096]{0}', space=vmem, size = 0x1000, scoped, tag = 'input window, operand 0, single buffered']
    #allocation4 [shape = 's32[1]{0}', space=sflag, size = 0x4, scoped, tag = 'scoped memory for tpu_custom_call.1']
    #allocation5 [shape = 'u8[53248]{0}', space=vmem, size = 0xd000, scoped, tag = 'input window, operand 1, single buffered']
    #allocation6 [shape = 's32[1]{0}', space=sflag, size = 0x4, scoped, tag = 'scoped memory for tpu_custom_call.1']
    #allocation7 [shape = 'u8[65536]{0}', space=vmem, size = 0x10000, scoped, tag = 'input window, operand 3, single buffered']
    %14 = vsyncpa [#allocation4], 0
    %15 = vsyncpa [#allocation6], 0
    // Predicated region
    $region2: #{tpu_custom_call.1} parent=1 // pred_check
      _
    $region3: #{tpu_custom_call.1} parent=1 // pred_check_branch
      %17 = sbr.rel (0) target = $region5
    $region4: #{tpu_custom_call.1} parent=1 // pred_region
      %s19 = ssub.s32 128, 128
      %20 = vsyncadd [#allocation4], %s19
      %s22 = sshll.u32 [#allocation3], 4
      %s23 = int_to_ptr.vmem [resolvable:$true] %s22
      %25 = dma.hbm_to_vmem [thread:$0]  %s0, 128, %s23, [#allocation4]
    $region5: #{tpu_custom_call.1} parent=1 // pred_fallthru
      _
    // Predicated region
    $region6: #{tpu_custom_call.1} parent=1 // pred_check
      _
    $region7: #{tpu_custom_call.1} parent=1 // pred_check_branch
      %27 = sbr.rel (0) target = $region9
    $region8: #{tpu_custom_call.1} parent=1 // pred_region
      %s29 = ssub.s32 1664, 1664
      %30 = vsyncadd [#allocation6], %s29
      %s31 = sshll.u32 [#allocation5], 4
      %s32 = int_to_ptr.vmem [resolvable:$true] %s31
      %37 = dma.hbm_to_vmem [thread:$0]  %s1, 1664, %s32, [#allocation6], 128, 128, 8
    $region9: #{tpu_custom_call.1} parent=1 // pred_fallthru
      _
    // Predicated region
    $region10: #{tpu_custom_call.1} parent=1 // pred_check
      _
    $region11: #{tpu_custom_call.1} parent=1 // pred_check_branch
      %39 = sbr.rel (0) target = $region13
    $region12: #{tpu_custom_call.1} parent=1 // pred_region
      _
    $region13: #{tpu_custom_call.1} parent=1 // pred_fallthru
      _
    // Predicated region
    $region14: #{tpu_custom_call.1} parent=1 // pred_check
      _
    $region15: #{tpu_custom_call.1} parent=1 // pred_check_branch
      %41 = sbr.rel (0) target = $region17
    $region16: #{tpu_custom_call.1} parent=1 // pred_region
      %s43 = ssub.s32 2048, 2048
      %44 = vsyncadd [#allocation6], %s43
      %s45 = sshll.u32 [#allocation7], 4
      %s46 = int_to_ptr.vmem [resolvable:$true] %s45
      %51 = dma.hbm_to_vmem [thread:$0]  %s3, 2048, %s46, [#allocation6], 128, 128, 8
    $region17: #{tpu_custom_call.1} parent=1 // pred_fallthru
      _
    // Predicated region
    $region18: #{tpu_custom_call.1} parent=1 // pred_check
      _
    $region19: #{tpu_custom_call.1} parent=1 // pred_check_branch
      %53 = sbr.rel (0) target = $region21
    $region20: #{tpu_custom_call.1} parent=1 // pred_region
      _
    $region21: #{tpu_custom_call.1} parent=1 // pred_fallthru
      _
    // Predicated region
    $region22: #{tpu_custom_call.1} parent=1 // pred_check
      _
    $region23: #{tpu_custom_call.1} parent=1 // pred_check_branch
      %55 = sbr.rel (0) target = $region25
    $region24: #{tpu_custom_call.1} parent=1 // pred_region
      _
    $region25: #{tpu_custom_call.1} parent=1 // pred_fallthru
      _
    // Predicated region
    $region26: #{tpu_custom_call.1} parent=1 // pred_check
      _
    $region27: #{tpu_custom_call.1} parent=1 // pred_check_branch
      %57 = sbr.rel (0) target = $region29
    $region28: #{tpu_custom_call.1} parent=1 // pred_region
      _
    $region29: #{tpu_custom_call.1} parent=1 // pred_fallthru
      _
    // Predicated region
    $region30: #{tpu_custom_call.1} parent=1 // pred_check
      _
    $region31: #{tpu_custom_call.1} parent=1 // pred_check_branch
      %59 = sbr.rel (0) target = $region33
    $region32: #{tpu_custom_call.1} parent=1 // pred_region
      %60 = dma.done [#allocation4], 128
    $region33: #{tpu_custom_call.1} parent=1 // pred_fallthru
      _
    // Predicated region
    $region34: #{tpu_custom_call.1} parent=1 // pred_check
      _
    $region35: #{tpu_custom_call.1} parent=1 // pred_check_branch
      %62 = sbr.rel (0) target = $region37
    $region36: #{tpu_custom_call.1} parent=1 // pred_region
      %63 = dma.done [#allocation6], 1664
    $region37: #{tpu_custom_call.1} parent=1 // pred_fallthru
      _
    // Predicated region
    $region38: #{tpu_custom_call.1} parent=1 // pred_check
      _
    $region39: #{tpu_custom_call.1} parent=1 // pred_check_branch
      %65 = sbr.rel (0) target = $region41
    $region40: #{tpu_custom_call.1} parent=1 // pred_region
      %66 = dma.done [#allocation6], 2048
    $region41: #{tpu_custom_call.1} parent=1 // pred_fallthru
      _
    %v67 = vld [vmem:[#allocation3] sm:$0xff]
    %v68 = vld [vmem:[#allocation5] sm:$0xff]
    %v69 = vld [vmem:[#allocation5 + $0x8] sm:$0xff]
    %v70 = vld [vmem:[#allocation5 + $0x10] sm:$0xff]
    %v71 = vld [vmem:[#allocation5 + $0x18] sm:$0xff]
    %v72 = vld [vmem:[#allocation5 + $0x20] sm:$0xff]
    %v73 = vld [vmem:[#allocation5 + $0x28] sm:$0xff]
    %v74 = vld [vmem:[#allocation5 + $0x30] sm:$0xff]
    %v75 = vld [vmem:[#allocation5 + $0x38] sm:$0xff]
    %v76 = vld [vmem:[#allocation5 + $0x40] sm:$0xff]
    %v77 = vld [vmem:[#allocation5 + $0x48] sm:$0xff]
    %v78 = vld [vmem:[#allocation5 + $0x50] sm:$0xff]
    %v79 = vld [vmem:[#allocation5 + $0x58] sm:$0xff]
    %v80 = vld [vmem:[#allocation5 + $0x60] sm:$0xf]
    %v81 = vld [vmem:[%s2] sm:$0x1]
    %v83 = vlaneseq
    %v84 = vshrl.u32 %v83, 7
    %v85 = vsub.s32 0, %v84
    %v86 = vrot.slane %v81, %v85
    %vm88 = vcmask 818176
    %v90 = vsel %vm88, %v67, 0
    %vm92 = vcmask 1043456
    %v94 = vsel %vm92, %v80, 0
    %96 = vmatprep.subr.mxu0 0.0
    %97 = vmatpush1.msra.mxu0 %v68
    %98 = vmatprep.subr.mxu0 0.0
    %99 = vmatpush1.msra.mxu0 %v69
    %100 = vmatprep.subr.mxu0 0.0
    %101 = vmatpush1.msra.mxu0 %v70
    %102 = vmatprep.subr.mxu0 0.0
    %103 = vmatpush1.msra.mxu0 %v71
    %104 = vmatprep.subr.mxu0 0.0
    %105 = vmatpush1.msra.mxu0 %v72
    %106 = vmatprep.subr.mxu0 0.0
    %107 = vmatpush1.msra.mxu0 %v73
    %108 = vmatprep.subr.mxu0 0.0
    %109 = vmatpush1.msra.mxu0 %v74
    %110 = vmatprep.subr.mxu0 0.0
    %111 = vmatpush1.msra.mxu0 %v75
    %112 = vmatprep.subr.mxu0 0.0
    %113 = vmatpush1.msra.mxu0 %v76
    %114 = vmatprep.subr.mxu0 0.0
    %115 = vmatpush1.msra.mxu0 %v77
    %116 = vmatprep.subr.mxu0 0.0
    %117 = vmatpush1.msra.mxu0 %v78
    %118 = vmatprep.subr.mxu0 0.0
    %119 = vmatpush1.msra.mxu0 %v79
    %120 = vmatprep.subr.mxu0 0.0
    %121 = vmatpush1.msra.mxu0 %v94
    %122 = vmatprep.subr.mxu0 0.0
    %123 = vmatpush1.msra.mxu0 0.0
    %124 = vmatprep.subr.mxu0 0.0
    %125 = vmatpush1.msra.mxu0 0.0
    %126 = vmatprep.subr.mxu0 0.0
    %127 = vmatpush1.msra.mxu0 0.0
    %128 = vmatprep.subr.mxu0 0.0
    %129 = vmatpush1.msra.mxu0 0.0
    %130 = vmatprep.subr.mxu0 0.0
    %131 = vmatpush1.msra.mxu0 0.0
    %132 = vmatprep.subr.mxu0 0.0
    %133 = vmatpush1.msra.mxu0 0.0
    %134 = vmatprep.subr.mxu0 0.0
    %135 = vmatpush1.msra.mxu0 0.0
    %136 = vmatprep.subr.mxu0 0.0
    %137 = vmatpush1.msra.mxu0 0.0
    %138 = vmatprep.subr.mxu0 0.0
    %139 = vmatpush1.msra.mxu0 0.0
    %140 = vmatprep.subr.mxu0 0.0
    %141 = vmatpush1.msra.mxu0 0.0
    %142 = vmatprep.subr.mxu0 0.0
    %143 = vmatpush1.msra.mxu0 0.0
    %144 = vmatprep.subr.mxu0 0.0
    %145 = vmatpush1.msra.mxu0 0.0
    %146 = vmatprep.subr.mxu0 0.0
    %147 = vmatpush1.msra.mxu0 0.0
    %148 = vmatprep.subr.mxu0 0.0
    %149 = vmatpush1.msra.mxu0 0.0
    %150 = vmatprep.subr.mxu0 0.0
    %151 = vmatpush1.msra.mxu0 0.0
    %152 = vmatprep.subr.mxu0 0.0
    %153 = vmatpush1.msra.mxu0 0.0
    %154 = vmatprep.subr.mxu0 0.0
    %155 = vmatpush1.msra.mxu0 0.0
    %156 = vmatprep.subr.mxu0 0.0
    %157 = vmatpush1.msra.mxu0 0.0
    %158 = vmatprep.subr.mxu0 0.0
    %159 = vmatpush1.msra.mxu0 0.0
    %160 = vmatprep.mubr.f32.mxu0 0.0
    %161 = vmatmul.mubr.f32.gmra.mrb[0].mxu0 %v90
    %v162 = vpop.f32.mrb[0].mxu0
    %v163 = vadd.f32 %v86, %v162
    %v164 = vpop.f32.mrb[0].mxu0
    %165 = vdwg.mxu0
    %v166 = vxor.u32 %v163, 2147483648
    %v167 = vmul.f32 %v166, 1.442695
    %v168 = vpow.pop %v167
    %v169 = vadd.f32 %v168, 1.0
    %v170 = vrcp.pop %v169
    %v171 = vmul.f32 1.0, %v170
    %v172 = vld [vmem:[#allocation7] sm:$0xff]
    %v173 = vld [vmem:[#allocation7 + $0x8] sm:$0xff]
    %v174 = vld [vmem:[#allocation7 + $0x10] sm:$0xff]
    %v175 = vld [vmem:[#allocation7 + $0x18] sm:$0xff]
    %v176 = vld [vmem:[#allocation7 + $0x20] sm:$0xff]
    %v177 = vld [vmem:[#allocation7 + $0x28] sm:$0xff]
    %v178 = vld [vmem:[#allocation7 + $0x30] sm:$0xff]
    %v179 = vld [vmem:[#allocation7 + $0x38] sm:$0xff]
    %v180 = vld [vmem:[#allocation7 + $0x40] sm:$0xff]
    %v181 = vld [vmem:[#allocation7 + $0x48] sm:$0xff]
    %v182 = vld [vmem:[#allocation7 + $0x50] sm:$0xff]
    %v183 = vld [vmem:[#allocation7 + $0x58] sm:$0xff]
    %v184 = vld [vmem:[#allocation7 + $0x60] sm:$0xff]
    %v185 = vld [vmem:[#allocation7 + $0x68] sm:$0xff]
    %v186 = vld [vmem:[#allocation7 + $0x70] sm:$0xff]
    %v187 = vld [vmem:[#allocation7 + $0x78] sm:$0xff]
    %v188 = vld [vmem:[%s4] sm:$0x1]
    %v190 = vlaneseq
    %v191 = vshrl.u32 %v190, 7
    %v192 = vsub.s32 0, %v191
    %v193 = vrot.slane %v188, %v192
    %195 = vmatprep.subr.mxu0 0.0
    %196 = vmatpush1.msra.mxu0 %v172
    %197 = vmatprep.subr.mxu0 0.0
    %198 = vmatpush1.msra.mxu0 %v173
    %199 = vmatprep.subr.mxu0 0.0
    %200 = vmatpush1.msra.mxu0 %v174
    %201 = vmatprep.subr.mxu0 0.0
    %202 = vmatpush1.msra.mxu0 %v175
    %203 = vmatprep.subr.mxu0 0.0
    %204 = vmatpush1.msra.mxu0 %v176
    %205 = vmatprep.subr.mxu0 0.0
    %206 = vmatpush1.msra.mxu0 %v177
    %207 = vmatprep.subr.mxu0 0.0
    %208 = vmatpush1.msra.mxu0 %v178
    %209 = vmatprep.subr.mxu0 0.0
    %210 = vmatpush1.msra.mxu0 %v179
    %211 = vmatprep.subr.mxu0 0.0
    %212 = vmatpush1.msra.mxu0 %v180
    %213 = vmatprep.subr.mxu0 0.0
    %214 = vmatpush1.msra.mxu0 %v181
    %215 = vmatprep.subr.mxu0 0.0
    %216 = vmatpush1.msra.mxu0 %v182
    %217 = vmatprep.subr.mxu0 0.0
    %218 = vmatpush1.msra.mxu0 %v183
    %219 = vmatprep.subr.mxu0 0.0
    %220 = vmatpush1.msra.mxu0 %v184
    %221 = vmatprep.subr.mxu0 0.0
    %222 = vmatpush1.msra.mxu0 %v185
    %223 = vmatprep.subr.mxu0 0.0
    %224 = vmatpush1.msra.mxu0 %v186
    %225 = vmatprep.subr.mxu0 0.0
    %226 = vmatpush1.msra.mxu0 %v187
    %227 = vmatprep.subr.mxu0 0.0
    %228 = vmatpush1.msra.mxu0 0.0
    %229 = vmatprep.subr.mxu0 0.0
    %230 = vmatpush1.msra.mxu0 0.0
    %231 = vmatprep.subr.mxu0 0.0
    %232 = vmatpush1.msra.mxu0 0.0
    %233 = vmatprep.subr.mxu0 0.0
    %234 = vmatpush1.msra.mxu0 0.0
    %235 = vmatprep.subr.mxu0 0.0
    %236 = vmatpush1.msra.mxu0 0.0
    %237 = vmatprep.subr.mxu0 0.0
    %238 = vmatpush1.msra.mxu0 0.0
    %239 = vmatprep.subr.mxu0 0.0
    %240 = vmatpush1.msra.mxu0 0.0
    %241 = vmatprep.subr.mxu0 0.0
    %242 = vmatpush1.msra.mxu0 0.0
    %243 = vmatprep.subr.mxu0 0.0
    %244 = vmatpush1.msra.mxu0 0.0
    %245 = vmatprep.subr.mxu0 0.0
    %246 = vmatpush1.msra.mxu0 0.0
    %247 = vmatprep.subr.mxu0 0.0
    %248 = vmatpush1.msra.mxu0 0.0
    %249 = vmatprep.subr.mxu0 0.0
    %250 = vmatpush1.msra.mxu0 0.0
    %251 = vmatprep.subr.mxu0 0.0
    %252 = vmatpush1.msra.mxu0 0.0
    %253 = vmatprep.subr.mxu0 0.0
    %254 = vmatpush1.msra.mxu0 0.0
    %255 = vmatprep.subr.mxu0 0.0
    %256 = vmatpush1.msra.mxu0 0.0
    %257 = vmatprep.subr.mxu0 0.0
    %258 = vmatpush1.msra.mxu0 0.0
    %259 = vmatprep.mubr.f32.mxu0 0.0
    %260 = vmatmul.mubr.f32.gmra.mrb[0].mxu0 %v171
    %v261 = vpop.f32.mrb[0].mxu0
    %v262 = vadd.f32 %v193, %v261
    %v263 = vpop.f32.mrb[0].mxu0
    %264 = vdwg.mxu0
    %v265 = vxor.u32 %v262, 2147483648
    %v266 = vmul.f32 %v265, 1.442695
    %v267 = vpow.pop %v266
    %v268 = vadd.f32 %v267, 1.0
    %v269 = vrcp.pop %v268
    %v270 = vmul.f32 1.0, %v269
    %v271 = vld [vmem:[%s5] sm:$0x1]
    %v273 = vlaneseq
    %v274 = vshrl.u32 %v273, 7
    %v275 = vsub.s32 0, %v274
    %v276 = vrot.slane %v271, %v275
    %v278 = vmul.f32 %v270, %v276
    %279 = vadd.xlane.f32.xlu0 %v278
    %v280 = vpop.xlane.xlu0 %279
    %v281 = vld [vmem:[#allocation2] sm:$0x1]
    %v283 = vlaneseq
    %v284 = vshrl.u32 %v283, 7
    %v285 = vsub.s32 0, %v284
    %v286 = vrot.slane %v281, %v285
    %v288 = vadd.f32 %v280, %v286
    %v289 = vxor.u32 %v288, 2147483648
    %v290 = vmul.f32 %v289, 1.442695
    %v291 = vpow.pop %v290
    %v292 = vadd.f32 %v291, 1.0
    %v293 = vrcp.pop %v292
    %v294 = vmul.f32 1.0, %v293
    %vm295 = vcmask 7168
    %296 = vst.msk [vmem:[%s7] sm:$0xff] %vm295, %v294
    // Predicated region
    $region42: #{tpu_custom_call.1} parent=1 // pred_check
      _
    $region43: #{tpu_custom_call.1} parent=1 // pred_check_branch
      %298 = sbr.rel (0) target = $region45
    $region44: #{tpu_custom_call.1} parent=1 // pred_region
      _
    $region45: #{tpu_custom_call.1} parent=1 // pred_fallthru
      _
    // Predicated region
    $region46: #{tpu_custom_call.1} parent=1 // pred_check
      _
    $region47: #{tpu_custom_call.1} parent=1 // pred_check_branch
      %300 = sbr.rel (0) target = $region49
    $region48: #{tpu_custom_call.1} parent=1 // pred_region
      _
    $region49: #{tpu_custom_call.1} parent=1 // pred_fallthru
      _
    %301 = vsyncpa [#allocation4], 1
    %302 = vsyncpa [#allocation6], 1

</llo_original>
